<compile_context>
chip_gen: v5e
topology: v5e:2x2
jax: 0.10.0
libtpu: 0.0.40
codegen_flags: <defaults>
</compile_context>

<pallas_src>
import functools

import jax
import jax.numpy as jnp
from jax.experimental import pallas as pl
from jax.experimental.pallas import tpu as pltpu

_SIXTH = 1.0 / 6.0


def fuse_net_kernel(*refs, nl, se, batch, hw):
    if se == 1:
        x_ref, w1_ref, sf_ref, bf_ref, sew1_ref, sew2_ref, w2_ref, o_ref = refs
    else:
        x_ref, w1_ref, sf_ref, bf_ref, w2_ref, o_ref = refs

    # conv1 (1x1) with conv1_bn folded into the augmented weight (bias column
    # hits the ones-row appended to x).  f32 accumulation on the MXU.
    h = jnp.dot(w1_ref[...], x_ref[...],
                preferred_element_type=jnp.float32)            # (E, B*HW) f32

    # First non-linearity (relu / hswish) in f32 on the half-size tensor.
    if nl == 0:
        h = jnp.maximum(h, 0.0)
    else:
        h = h * jnp.clip((h + 3.0) * _SIXTH, 0.0, 1.0)         # hswish

    # NOTE: conv_f1 / conv_f2 outputs are dead in the reference forward (their
    # BNs are applied to the conv1 activation), so only the folded BNs run.
    # Stack both branches into one (2E, B*HW) tensor (full 16-sublane packing
    # in bf16) and apply the folded conv_f1_bn / conv_f2_bn affines.
    xc = jnp.concatenate([h, h], axis=0).astype(sf_ref.dtype)  # (2E, B*HW)
    xc = xc * sf_ref[...] + bf_ref[...]

    if se == 1:
        # SEModule(2E): per-batch spatial mean over the 128-aligned lane
        # segment of each batch, tiny MLP kept on VPU/XLU in f32.
        w1t = sew1_ref[...]                                    # (2E, R) = se_w1.T
        w2m = sew2_ref[...]                                    # (2E, R) = se_w2
        inv_hw = 1.0 / float(hw)
        segs = []
        for b in range(batch):                                 # static unroll
            seg = xc[:, b * hw:(b + 1) * hw]                   # (2E, HW)
            y = jnp.sum(seg.astype(jnp.float32), axis=1,
                        keepdims=True) * inv_hw                # (2E, 1)
            z = jnp.maximum(
                jnp.sum(w1t * y, axis=0, keepdims=True), 0.0)  # (1, R)
            g = jnp.clip((jnp.sum(w2m * z, axis=1, keepdims=True) + 3.0)
                         * _SIXTH, 0.0, 1.0)                   # (2E, 1) hsigmoid
            segs.append(seg * g.astype(seg.dtype))
        xc = jnp.concatenate(segs, axis=1) if batch > 1 else segs[0]

    # hsigmoid followed by the second non-linearity.  s = hsigmoid(x) is in
    # [0,1], so relu(s) = s and hswish(s) = s*(s+3)/6 exactly (clip is a no-op).
    s = jnp.clip((xc + 3.0) * _SIXTH, 0.0, 1.0)
    if nl == 1:
        s = s * ((s + 3.0) * _SIXTH)

    # conv2 (1x1) over the stacked channels: one (O,2E)@(2E,B*HW) matmul.
    out = jnp.dot(w2_ref[...], s.astype(w2_ref.dtype),
                  preferred_element_type=jnp.float32)          # (O, B*HW) f32
    # NOTE: emit bf16 here instead if downstream tolerates it (big HBM win on
    # v5e); kept f32 to preserve the module's output dtype.
    o_ref[...] = out.astype(o_ref.dtype)


def fuse_net_forward(x, params, *, nl, se, ew_dtype=None):
    """x: (B, C, H, W) float32 -> (B, O, H, W) float32."""
    B, C, H, W = x.shape
    HW = H * W
    O = params["w2"].shape[0]

    if ew_dtype is None:
        # v5e has no bf16 VALU -> keep the elementwise chain in f32 there;
        # v6e/v7x get bf16 elementwise (half the VALU-slot pressure at scale).
        kind = jax.devices()[0].device_kind.lower()
        ew_dtype = jnp.float32 if "v5" in kind else jnp.bfloat16

    # NCHW -> (C, B*HW): channels on sublanes, batch folded into lanes
    # (each batch occupies a 128-aligned lane segment of width HW).
    xf = x.reshape(B, C, HW).transpose(1, 0, 2).reshape(C, B * HW)
    x_aug = jnp.concatenate(
        [xf, jnp.ones((1, B * HW), xf.dtype)], axis=0).astype(jnp.bfloat16)

    # Fold conv1_bn (scale, shift) into an augmented conv1 weight (E, C+1).
    w1_aug = jnp.concatenate(
        [params["bn1_s"] * params["w1"], params["bn1_b"]],
        axis=1).astype(jnp.bfloat16)

    # Stacked conv_f1_bn / conv_f2_bn affines for the (2E, B*HW) tensor.
    sf = jnp.concatenate([params["bnf1_s"], params["bnf2_s"]],
                         axis=0).astype(ew_dtype)              # (2E, 1)
    bf = jnp.concatenate([params["bnf1_b"], params["bnf2_b"]],
                         axis=0).astype(ew_dtype)              # (2E, 1)

    w2 = params["w2"].astype(jnp.bfloat16)                     # (O, 2E)

    args = [x_aug, w1_aug, sf, bf]
    if se == 1:
        args += [params["se_w1"].T.astype(jnp.float32),        # (2E, R)
                 params["se_w2"].astype(jnp.float32)]          # (2E, R)
    args.append(w2)

    vmem = pl.BlockSpec(memory_space=pltpu.MemorySpace.VMEM)
    out = pl.pallas_call(
        functools.partial(fuse_net_kernel, nl=nl, se=se, batch=B, hw=HW),
        out_shape=jax.ShapeDtypeStruct((O, B * HW), jnp.float32),
        in_specs=[vmem] * len(args),
        out_specs=vmem,
    )(*args)

    return out.reshape(O, B, HW).transpose(1, 0, 2).reshape(B, O, H, W)


def fuse_net_reference(x, params, *, nl, se):
    """Pure-f32 jnp reference, faithful to the PyTorch forward (eval-mode BN)."""
    B, C, H, W = x.shape
    xf = x.reshape(B, C, H * W)

    def hsig(v):
        return jnp.clip(v + 3.0, 0.0, 6.0) / 6.0

    def hsw(v):
        return v * hsig(v)

    h = jnp.einsum("ec,bcs->bes", params["w1"], xf)
    h = h * params["bn1_s"][None] + params["bn1_b"][None]
    h = jnp.maximum(h, 0.0) if nl == 0 else hsw(h)
    x1 = h * params["bnf1_s"][None] + params["bnf1_b"][None]
    x2 = h * params["bnf2_s"][None] + params["bnf2_b"][None]
    xc = jnp.concatenate([x1, x2], axis=1)
    if se == 1:
        y = jnp.mean(xc, axis=2, keepdims=True)
        z = jnp.maximum(jnp.einsum("rc,bcs->brs", params["se_w1"], y), 0.0)
        g = hsig(jnp.einsum("cr,brs->bcs", params["se_w2"], z))
        xc = xc * g
    xc = hsig(xc)
    xc = jnp.maximum(xc, 0.0) if nl == 0 else hsw(xc)
    out = jnp.einsum("oc,bcs->bos", params["w2"], xc)
    return out.reshape(B, -1, H, W)


def init_params(key, c, e, o, reduction=4):
    r = (2 * e) // reduction
    keys = jax.random.split(key, 16)

    def bn_fold(kg, kb, km, kv, n):
        gamma = jax.random.uniform(kg, (n,), minval=0.5, maxval=1.5)
        beta = 0.1 * jax.random.normal(kb, (n,))
        mean = 0.1 * jax.random.normal(km, (n,))
        var = jax.random.uniform(kv, (n,), minval=0.5, maxval=1.5)
        scale = gamma / jnp.sqrt(var + 1e-5)
        shift = beta - mean * scale
        return (scale.reshape(n, 1).astype(jnp.float32),
                shift.reshape(n, 1).astype(jnp.float32))

    bn1_s, bn1_b = bn_fold(keys[1], keys[2], keys[3], keys[4], e)
    bnf1_s, bnf1_b = bn_fold(keys[5], keys[6], keys[7], keys[8], e)
    bnf2_s, bnf2_b = bn_fold(keys[9], keys[10], keys[11], keys[12], e)

    return {
        "w1": 0.3 * jax.random.normal(keys[0], (e, c), dtype=jnp.float32),
        "bn1_s": bn1_s, "bn1_b": bn1_b,
        "bnf1_s": bnf1_s, "bnf1_b": bnf1_b,
        "bnf2_s": bnf2_s, "bnf2_b": bnf2_b,
        "se_w1": 0.3 * jax.random.normal(keys[13], (r, 2 * e), dtype=jnp.float32),
        "se_w2": 0.3 * jax.random.normal(keys[14], (2 * e, r), dtype=jnp.float32),
        "w2": 0.3 * jax.random.normal(keys[15], (o, 2 * e), dtype=jnp.float32),
    }


if __name__ == "__main__":
    # Fuse_Net(channels=4, kernel_size=[3,3], exp_size=8, out_size=8, SE=1, NL=1, stride=1)
    B, C, H, W = 2, 4, 16, 16
    E, O = 8, 8
    NL, SE = 1, 1

    key = jax.random.PRNGKey(0)
    kx, kp = jax.random.split(key)
    x = jax.random.normal(kx, (B, C, H, W), dtype=jnp.float32)
    params = init_params(kp, C, E, O)

    out = fuse_net_forward(x, params, nl=NL, se=SE)
    out = jax.block_until_ready(out)

    ref = fuse_net_reference(x, params, nl=NL, se=SE)
    assert out.shape == (B, O, H, W), out.shape
    # Tolerance covers end-to-end bf16 operands / bf16 elementwise on v6e/v7x
    # (f32 accumulation); the f32 reference above is faithful to the module.
    assert jnp.allclose(out, ref, atol=2e-2, rtol=2e-2), (
        "mismatch vs reference, max abs diff = %g"
        % float(jnp.max(jnp.abs(out - ref))))

    print("KERNEL_OK")
</pallas_src>

<mosaic_0001>
module attributes {stable_mosaic.version = 11 : i64} {
  func.func @fuse_net_kernel(%arg0: memref<5x512xbf16, #tpu.memory_space<vmem>>, %arg1: memref<8x5xbf16, #tpu.memory_space<vmem>>, %arg2: memref<16x1xbf16, #tpu.memory_space<vmem>>, %arg3: memref<16x1xbf16, #tpu.memory_space<vmem>>, %arg4: memref<16x4xf32, #tpu.memory_space<vmem>>, %arg5: memref<16x4xf32, #tpu.memory_space<vmem>>, %arg6: memref<8x16xbf16, #tpu.memory_space<vmem>>, %arg7: memref<8x512xf32, #tpu.memory_space<vmem>>) attributes {dimension_semantics = [], scalar_prefetch = 0 : i64, scratch_operands = 0 : i64, tpu.core_type = #tpu.core_type<tc>} {
    %c0 = arith.constant 0 : index
    %c0_0 = arith.constant 0 : index
    %0 = vector.load %arg1[%c0, %c0_0] : memref<8x5xbf16, #tpu.memory_space<vmem>>, vector<8x5xbf16>
    %c0_1 = arith.constant 0 : index
    %c0_2 = arith.constant 0 : index
    %1 = vector.load %arg0[%c0_1, %c0_2] : memref<5x512xbf16, #tpu.memory_space<vmem>>, vector<5x512xbf16>
    %cst = arith.constant dense<0.000000e+00> : vector<8x512xf32>
    %2 = tpu.matmul %0, %1, %cst {dimension_numbers = #tpu.dot_dimension_numbers<[1], [0], [0], [1], [0, 0, 1, 1], [], []>} : vector<8x5xbf16>, vector<5x512xbf16>, vector<8x512xf32> -> vector<8x512xf32>
    %cst_3 = arith.constant 3.000000e+00 : f32
    %3 = vector.broadcast %cst_3 : f32 to vector<8x512xf32>
    %4 = arith.addf %2, %3 : vector<8x512xf32>
    %cst_4 = arith.constant 0.166666672 : f32
    %5 = vector.broadcast %cst_4 : f32 to vector<8x512xf32>
    %6 = arith.mulf %4, %5 : vector<8x512xf32>
    %cst_5 = arith.constant 0.000000e+00 : f32
    %cst_6 = arith.constant 1.000000e+00 : f32
    %7 = vector.broadcast %cst_5 : f32 to vector<8x512xf32>
    %8 = arith.maximumf %7, %6 : vector<8x512xf32>
    %9 = vector.broadcast %cst_6 : f32 to vector<8x512xf32>
    %10 = arith.minimumf %9, %8 : vector<8x512xf32>
    %11 = arith.mulf %2, %10 : vector<8x512xf32>
    %12 = tpu.concatenate %11, %11 in 0 : vector<8x512xf32>, vector<8x512xf32> -> vector<16x512xf32>
    %13 = arith.truncf %12 : vector<16x512xf32> to vector<16x512xbf16>
    %c0_7 = arith.constant 0 : index
    %c0_8 = arith.constant 0 : index
    %14 = vector.load %arg2[%c0_7, %c0_8] : memref<16x1xbf16, #tpu.memory_space<vmem>>, vector<16x1xbf16>
    %15 = vector.broadcast %14 : vector<16x1xbf16> to vector<16x512xbf16>
    %16 = arith.mulf %13, %15 : vector<16x512xbf16>
    %c0_9 = arith.constant 0 : index
    %c0_10 = arith.constant 0 : index
    %17 = vector.load %arg3[%c0_9, %c0_10] : memref<16x1xbf16, #tpu.memory_space<vmem>>, vector<16x1xbf16>
    %18 = vector.broadcast %17 : vector<16x1xbf16> to vector<16x512xbf16>
    %19 = arith.addf %16, %18 : vector<16x512xbf16>
    %c0_11 = arith.constant 0 : index
    %c0_12 = arith.constant 0 : index
    %20 = vector.load %arg4[%c0_11, %c0_12] : memref<16x4xf32, #tpu.memory_space<vmem>>, vector<16x4xf32>
    %c0_13 = arith.constant 0 : index
    %c0_14 = arith.constant 0 : index
    %21 = vector.load %arg5[%c0_13, %c0_14] : memref<16x4xf32, #tpu.memory_space<vmem>>, vector<16x4xf32>
    %22 = vector.extract_strided_slice %19 {offsets = [0, 0], sizes = [16, 256], strides = [1, 1]} : vector<16x512xbf16> to vector<16x256xbf16>
    %23 = arith.extf %22 : vector<16x256xbf16> to vector<16x256xf32>
    %cst_15 = arith.constant dense<0.000000e+00> : vector<16xf32>
    %24 = vector.multi_reduction <add>, %23, %cst_15 [1] : vector<16x256xf32> to vector<16xf32>
    %25 = vector.shape_cast %24 : vector<16xf32> to vector<16x1xf32>
    %cst_16 = arith.constant 3.906250e-03 : f32
    %26 = vector.broadcast %cst_16 : f32 to vector<16x1xf32>
    %27 = arith.mulf %25, %26 : vector<16x1xf32>
    %28 = vector.broadcast %27 : vector<16x1xf32> to vector<16x4xf32>
    %29 = arith.mulf %20, %28 : vector<16x4xf32>
    %cst_17 = arith.constant dense<0.000000e+00> : vector<4xf32>
    %30 = vector.multi_reduction <add>, %29, %cst_17 [0] : vector<16x4xf32> to vector<4xf32>
    %31 = vector.shape_cast %30 : vector<4xf32> to vector<1x4xf32>
    %cst_18 = arith.constant 0.000000e+00 : f32
    %32 = vector.broadcast %cst_18 : f32 to vector<1x4xf32>
    %33 = arith.maximumf %31, %32 : vector<1x4xf32>
    %34 = vector.broadcast %33 : vector<1x4xf32> to vector<16x4xf32>
    %35 = arith.mulf %21, %34 : vector<16x4xf32>
    %cst_19 = arith.constant dense<0.000000e+00> : vector<16xf32>
    %36 = vector.multi_reduction <add>, %35, %cst_19 [1] : vector<16x4xf32> to vector<16xf32>
    %37 = vector.shape_cast %36 : vector<16xf32> to vector<16x1xf32>
    %cst_20 = arith.constant 3.000000e+00 : f32
    %38 = vector.broadcast %cst_20 : f32 to vector<16x1xf32>
    %39 = arith.addf %37, %38 : vector<16x1xf32>
    %cst_21 = arith.constant 0.166666672 : f32
    %40 = vector.broadcast %cst_21 : f32 to vector<16x1xf32>
    %41 = arith.mulf %39, %40 : vector<16x1xf32>
    %cst_22 = arith.constant 0.000000e+00 : f32
    %cst_23 = arith.constant 1.000000e+00 : f32
    %42 = vector.broadcast %cst_22 : f32 to vector<16x1xf32>
    %43 = arith.maximumf %42, %41 : vector<16x1xf32>
    %44 = vector.broadcast %cst_23 : f32 to vector<16x1xf32>
    %45 = arith.minimumf %44, %43 : vector<16x1xf32>
    %46 = arith.truncf %45 : vector<16x1xf32> to vector<16x1xbf16>
    %47 = vector.broadcast %46 : vector<16x1xbf16> to vector<16x256xbf16>
    %48 = arith.mulf %22, %47 : vector<16x256xbf16>
    %49 = vector.extract_strided_slice %19 {offsets = [0, 256], sizes = [16, 256], strides = [1, 1]} : vector<16x512xbf16> to vector<16x256xbf16>
    %50 = arith.extf %49 : vector<16x256xbf16> to vector<16x256xf32>
    %cst_24 = arith.constant dense<0.000000e+00> : vector<16xf32>
    %51 = vector.multi_reduction <add>, %50, %cst_24 [1] : vector<16x256xf32> to vector<16xf32>
    %52 = vector.shape_cast %51 : vector<16xf32> to vector<16x1xf32>
    %cst_25 = arith.constant 3.906250e-03 : f32
    %53 = vector.broadcast %cst_25 : f32 to vector<16x1xf32>
    %54 = arith.mulf %52, %53 : vector<16x1xf32>
    %55 = vector.broadcast %54 : vector<16x1xf32> to vector<16x4xf32>
    %56 = arith.mulf %20, %55 : vector<16x4xf32>
    %cst_26 = arith.constant dense<0.000000e+00> : vector<4xf32>
    %57 = vector.multi_reduction <add>, %56, %cst_26 [0] : vector<16x4xf32> to vector<4xf32>
    %58 = vector.shape_cast %57 : vector<4xf32> to vector<1x4xf32>
    %cst_27 = arith.constant 0.000000e+00 : f32
    %59 = vector.broadcast %cst_27 : f32 to vector<1x4xf32>
    %60 = arith.maximumf %58, %59 : vector<1x4xf32>
    %61 = vector.broadcast %60 : vector<1x4xf32> to vector<16x4xf32>
    %62 = arith.mulf %21, %61 : vector<16x4xf32>
    %cst_28 = arith.constant dense<0.000000e+00> : vector<16xf32>
    %63 = vector.multi_reduction <add>, %62, %cst_28 [1] : vector<16x4xf32> to vector<16xf32>
    %64 = vector.shape_cast %63 : vector<16xf32> to vector<16x1xf32>
    %cst_29 = arith.constant 3.000000e+00 : f32
    %65 = vector.broadcast %cst_29 : f32 to vector<16x1xf32>
    %66 = arith.addf %64, %65 : vector<16x1xf32>
    %cst_30 = arith.constant 0.166666672 : f32
    %67 = vector.broadcast %cst_30 : f32 to vector<16x1xf32>
    %68 = arith.mulf %66, %67 : vector<16x1xf32>
    %cst_31 = arith.constant 0.000000e+00 : f32
    %cst_32 = arith.constant 1.000000e+00 : f32
    %69 = vector.broadcast %cst_31 : f32 to vector<16x1xf32>
    %70 = arith.maximumf %69, %68 : vector<16x1xf32>
    %71 = vector.broadcast %cst_32 : f32 to vector<16x1xf32>
    %72 = arith.minimumf %71, %70 : vector<16x1xf32>
    %73 = arith.truncf %72 : vector<16x1xf32> to vector<16x1xbf16>
    %74 = vector.broadcast %73 : vector<16x1xbf16> to vector<16x256xbf16>
    %75 = arith.mulf %49, %74 : vector<16x256xbf16>
    %76 = tpu.concatenate %48, %75 in 1 : vector<16x256xbf16>, vector<16x256xbf16> -> vector<16x512xbf16>
    %cst_33 = arith.constant 3.000000e+00 : bf16
    %77 = vector.broadcast %cst_33 : bf16 to vector<16x512xbf16>
    %78 = arith.addf %76, %77 : vector<16x512xbf16>
    %cst_34 = arith.constant 1.669920e-01 : bf16
    %79 = vector.broadcast %cst_34 : bf16 to vector<16x512xbf16>
    %80 = arith.mulf %78, %79 : vector<16x512xbf16>
    %cst_35 = arith.constant 0.000000e+00 : f32
    %cst_36 = arith.constant 1.000000e+00 : f32
    %81 = arith.truncf %cst_35 : f32 to bf16
    %82 = vector.broadcast %81 : bf16 to vector<16x512xbf16>
    %83 = arith.maximumf %82, %80 : vector<16x512xbf16>
    %84 = arith.truncf %cst_36 : f32 to bf16
    %85 = vector.broadcast %84 : bf16 to vector<16x512xbf16>
    %86 = arith.minimumf %85, %83 : vector<16x512xbf16>
    %cst_37 = arith.constant 3.000000e+00 : bf16
    %87 = vector.broadcast %cst_37 : bf16 to vector<16x512xbf16>
    %88 = arith.addf %86, %87 : vector<16x512xbf16>
    %cst_38 = arith.constant 1.669920e-01 : bf16
    %89 = vector.broadcast %cst_38 : bf16 to vector<16x512xbf16>
    %90 = arith.mulf %88, %89 : vector<16x512xbf16>
    %91 = arith.mulf %86, %90 : vector<16x512xbf16>
    %c0_39 = arith.constant 0 : index
    %c0_40 = arith.constant 0 : index
    %92 = vector.load %arg6[%c0_39, %c0_40] : memref<8x16xbf16, #tpu.memory_space<vmem>>, vector<8x16xbf16>
    %cst_41 = arith.constant dense<0.000000e+00> : vector<8x512xf32>
    %93 = tpu.matmul %92, %91, %cst_41 {dimension_numbers = #tpu.dot_dimension_numbers<[1], [0], [0], [1], [0, 0, 1, 1], [], []>} : vector<8x16xbf16>, vector<16x512xbf16>, vector<8x512xf32> -> vector<8x512xf32>
    %c0_42 = arith.constant 0 : index
    %c0_43 = arith.constant 0 : index
    %94 = vector.load %arg7[%c0_42, %c0_43] : memref<8x512xf32, #tpu.memory_space<vmem>>, vector<8x512xf32>
    tpu.vector_store %arg7[%c0_42, %c0_43], %93 {strides = array<i32>} : memref<8x512xf32, #tpu.memory_space<vmem>>, vector<8x512xf32>,
    return
  }
}

</mosaic_0001>

<llo_original>
// kernel: tpu_custom_call.1
$region0: #{tpu_custom_call.1}
  #allocation0 [shape = 'u32[]', space=smem, size = 0x4, offset = 0x4, fixed_abs, tag = 'smem constant byte address 0x4 - core index']
  #allocation1 [shape = 'u32[72,128]{1,0:T(1,128)}', space=vmem, size = 0x9000, scoped, tag = 'internal scratch']
  %s0 = inlined_call_operand.vmem [shape: bf16[5,512], index: 0, kind: input, shape index: {}]
  %s1 = inlined_call_operand.vmem [shape: bf16[8,5], index: 1, kind: input, shape index: {}]
  %s2 = inlined_call_operand.vmem [shape: bf16[16,1], index: 2, kind: input, shape index: {}]
  %s3 = inlined_call_operand.vmem [shape: bf16[16,1], index: 3, kind: input, shape index: {}]
  %s4 = inlined_call_operand.vmem [shape: f32[16,4], index: 4, kind: input, shape index: {}]
  %s5 = inlined_call_operand.vmem [shape: f32[16,4], index: 5, kind: input, shape index: {}]
  %s6 = inlined_call_operand.vmem [shape: bf16[8,16], index: 6, kind: input, shape index: {}]
  %s7 = inlined_call_operand.hbm [shape: f32[8,512], index: 7, kind: output, shape index: {}]
  %s8 = sld [smem:[#allocation0]]
  $region38: #{tpu_custom_call.1} parent=0
    _
  %s10 = ssub.s32 1, %s8
  %s11 = scalar_select 0, %s10, %s8
  $region1: #{tpu_custom_call.1} parent=0
    #allocation2 [shape = 'u8[16384]{0}', space=vmem, size = 0x4000, scoped, tag = 'output window, operand 0, single buffered']
    #allocation3 [shape = 's32[1]{0}', space=sflag, size = 0x4, scoped, tag = 'scoped memory for tpu_custom_call.1']
    %12 = vsyncpa [#allocation3], 0
    // Predicated region
    $region2: #{tpu_custom_call.1} parent=1 // pred_check
      _
    $region3: #{tpu_custom_call.1} parent=1 // pred_check_branch
      %14 = sbr.rel (0) target = $region5
    $region4: #{tpu_custom_call.1} parent=1 // pred_region
      _
    $region5: #{tpu_custom_call.1} parent=1 // pred_fallthru
      _
    // Predicated region
    $region6: #{tpu_custom_call.1} parent=1 // pred_check
      _
    $region7: #{tpu_custom_call.1} parent=1 // pred_check_branch
      %16 = sbr.rel (0) target = $region9
    $region8: #{tpu_custom_call.1} parent=1 // pred_region
      _
    $region9: #{tpu_custom_call.1} parent=1 // pred_fallthru
      _
    // Predicated region
    $region10: #{tpu_custom_call.1} parent=1 // pred_check
      _
    $region11: #{tpu_custom_call.1} parent=1 // pred_check_branch
      %18 = sbr.rel (0) target = $region13
    $region12: #{tpu_custom_call.1} parent=1 // pred_region
      _
    $region13: #{tpu_custom_call.1} parent=1 // pred_fallthru
      _
    // Predicated region
    $region14: #{tpu_custom_call.1} parent=1 // pred_check
      _
    $region15: #{tpu_custom_call.1} parent=1 // pred_check_branch
      %20 = sbr.rel (0) target = $region17
    $region16: #{tpu_custom_call.1} parent=1 // pred_region
      _
    $region17: #{tpu_custom_call.1} parent=1 // pred_fallthru
      _
    // Predicated region
    $region18: #{tpu_custom_call.1} parent=1 // pred_check
      _
    $region19: #{tpu_custom_call.1} parent=1 // pred_check_branch
      %22 = sbr.rel (0) target = $region21
    $region20: #{tpu_custom_call.1} parent=1 // pred_region
      _
    $region21: #{tpu_custom_call.1} parent=1 // pred_fallthru
      _
    // Predicated region
    $region22: #{tpu_custom_call.1} parent=1 // pred_check
      _
    $region23: #{tpu_custom_call.1} parent=1 // pred_check_branch
      %24 = sbr.rel (0) target = $region25
    $region24: #{tpu_custom_call.1} parent=1 // pred_region
      _
    $region25: #{tpu_custom_call.1} parent=1 // pred_fallthru
      _
    // Predicated region
    $region26: #{tpu_custom_call.1} parent=1 // pred_check
      _
    $region27: #{tpu_custom_call.1} parent=1 // pred_check_branch
      %26 = sbr.rel (0) target = $region29
    $region28: #{tpu_custom_call.1} parent=1 // pred_region
      _
    $region29: #{tpu_custom_call.1} parent=1 // pred_fallthru
      _
    %v28 = vld [vmem:[%s1] sm:$0xf]
    %v29 = vld [vmem:[%s0] sm:$0x77]
    %v30 = vld [vmem:[%s0 + $0x8] sm:$0x77]
    %v33 = vunpack.c.l.b16 %v29
    %v34 = vunpack.c.h.b16 %v29
    %v35 = vunpack.c.l.b16 %v30
    %v36 = vunpack.c.h.b16 %v30
    %v37 = vpack.c.b16 %v33, %v33
    %v38 = vpack.c.b16 %v34, %v34
    %v39 = vpack.c.b16 %v35, %v35
    %v40 = vpack.c.b16 %v36, %v36
    %vm41 = vcmask 39936
    %v43 = vsel %vm41, %v28, 0
    %vm45 = vcmask 1041408
    %vm46 = vcmask 1042432
    %v47 = vsel %vm45, 4294967295, 65535
    %v48 = vsel %vm46, %v47, 0
    %v50 = vand.u32 %v37, %v48
    %v53 = vand.u32 %v38, %v48
    %v56 = vand.u32 %v39, %v48
    %v59 = vand.u32 %v40, %v48
    %61 = vmatpush.bf16.msra.mxu0 0
    %62 = vmatpush.bf16.msra.mxu0 0
    %63 = vmatpush.bf16.msra.mxu0 0
    %64 = vmatpush.bf16.msra.mxu0 0
    %65 = vmatpush.bf16.msra.mxu0 0
    %66 = vmatpush.bf16.msra.mxu0 0
    %67 = vmatpush.bf16.msra.mxu0 0
    %68 = vmatpush.bf16.msra.mxu0 %v50
    %69 = vmatmul.bf16.gmra.mxu0 %v43
    %v70 = vpop.f32.mrf.mxu0
    %v71 = vadd.f32 0.0, %v70
    %v72 = vpop.f32.mrf.mxu0
    %73 = vdwg.mxu0
    %74 = vmatpush.bf16.msra.mxu0 0
    %75 = vmatpush.bf16.msra.mxu0 0
    %76 = vmatpush.bf16.msra.mxu0 0
    %77 = vmatpush.bf16.msra.mxu0 0
    %78 = vmatpush.bf16.msra.mxu0 0
    %79 = vmatpush.bf16.msra.mxu0 0
    %80 = vmatpush.bf16.msra.mxu0 0
    %81 = vmatpush.bf16.msra.mxu0 %v53
    %82 = vmatmul.bf16.gmra.mxu0 %v43
    %v83 = vpop.f32.mrf.mxu0
    %v84 = vadd.f32 0.0, %v83
    %v85 = vpop.f32.mrf.mxu0
    %86 = vdwg.mxu0
    %87 = vmatpush.bf16.msra.mxu0 0
    %88 = vmatpush.bf16.msra.mxu0 0
    %89 = vmatpush.bf16.msra.mxu0 0
    %90 = vmatpush.bf16.msra.mxu0 0
    %91 = vmatpush.bf16.msra.mxu0 0
    %92 = vmatpush.bf16.msra.mxu0 0
    %93 = vmatpush.bf16.msra.mxu0 0
    %94 = vmatpush.bf16.msra.mxu0 %v56
    %95 = vmatmul.bf16.gmra.mxu0 %v43
    %v96 = vpop.f32.mrf.mxu0
    %v97 = vadd.f32 0.0, %v96
    %v98 = vpop.f32.mrf.mxu0
    %99 = vdwg.mxu0
    %100 = vmatpush.bf16.msra.mxu0 0
    %101 = vmatpush.bf16.msra.mxu0 0
    %102 = vmatpush.bf16.msra.mxu0 0
    %103 = vmatpush.bf16.msra.mxu0 0
    %104 = vmatpush.bf16.msra.mxu0 0
    %105 = vmatpush.bf16.msra.mxu0 0
    %106 = vmatpush.bf16.msra.mxu0 0
    %107 = vmatpush.bf16.msra.mxu0 %v59
    %108 = vmatmul.bf16.gmra.mxu0 %v43
    %v109 = vpop.f32.mrf.mxu0
    %v110 = vadd.f32 0.0, %v109
    %v111 = vpop.f32.mrf.mxu0
    %112 = vdwg.mxu0
    %v113 = vadd.f32 %v71, 3.0
    %v114 = vadd.f32 %v84, 3.0
    %v115 = vadd.f32 %v97, 3.0
    %v116 = vadd.f32 %v110, 3.0
    %v117 = vmul.f32 %v113, 0.16666667
    %v118 = vmul.f32 %v114, 0.16666667
    %v119 = vmul.f32 %v115, 0.16666667
    %v120 = vmul.f32 %v116, 0.16666667
    %v121 = vmax.f32 %v117, 0.0
    %v122 = vmax.f32 %v118, 0.0
    %v123 = vmax.f32 %v119, 0.0
    %v124 = vmax.f32 %v120, 0.0
    %v125 = vmin.f32 %v121, 1.0
    %v126 = vmin.f32 %v122, 1.0
    %v127 = vmin.f32 %v123, 1.0
    %v128 = vmin.f32 %v124, 1.0
    %v129 = vmul.f32 %v71, %v125
    %v130 = vmul.f32 %v84, %v126
    %v131 = vmul.f32 %v97, %v127
    %v132 = vmul.f32 %v110, %v128
    %v133 = vpack.c.bf16 %v130, %v129
    %v134 = vpack.c.bf16 %v132, %v131
    %v135 = vld [vmem:[%s2] sm:$0xf]
    %v136 = vld [vmem:[%s2 + $0x4] sm:$0xf]
    %138 = vset.pattern.permute.xlu0 0
    %139 = vperm.xlu0 %138, %v135
    %v140 = vpop.permute.xlu0 %139
    %v143 = vunpack.c.l.s4 839922192
    %v144 = vunpack.c.0.s8 %v143
    %v145 = vperm.slane %v140, %v144
    %147 = vset.pattern.permute.xlu0 0
    %148 = vperm.xlu0 %147, %v136
    %v149 = vpop.permute.xlu0 %148
    %v152 = vunpack.c.l.s4 839922192
    %v153 = vunpack.c.0.s8 %v152
    %v154 = vperm.slane %v149, %v153
    %v155 = vunpack.c.l.bf16 %v133
    %v156 = vunpack.c.h.bf16 %v133
    %v157 = vunpack.c.l.bf16 %v134
    %v158 = vunpack.c.h.bf16 %v134
    %v159 = vunpack.c.l.bf16 %v145
    %v160 = vunpack.c.l.bf16 %v154
    %v161 = vmul.f32 %v155, %v159
    %v162 = vmul.f32 %v156, %v159
    %v163 = vmul.f32 %v157, %v159
    %v164 = vmul.f32 %v158, %v159
    %v165 = vmul.f32 %v155, %v160
    %v166 = vmul.f32 %v156, %v160
    %v167 = vmul.f32 %v157, %v160
    %v168 = vmul.f32 %v158, %v160
    %v169 = vpack.c.bf16 %v162, %v161
    %v170 = vpack.c.bf16 %v164, %v163
    %v171 = vpack.c.bf16 %v166, %v165
    %v172 = vpack.c.bf16 %v168, %v167
    %v173 = vld [vmem:[%s3] sm:$0xf]
    %v174 = vld [vmem:[%s3 + $0x4] sm:$0xf]
    %176 = vset.pattern.permute.xlu0 0
    %177 = vperm.xlu0 %176, %v173
    %v178 = vpop.permute.xlu0 %177
    %v181 = vunpack.c.l.s4 839922192
    %v182 = vunpack.c.0.s8 %v181
    %v183 = vperm.slane %v178, %v182
    %185 = vset.pattern.permute.xlu0 0
    %186 = vperm.xlu0 %185, %v174
    %v187 = vpop.permute.xlu0 %186
    %v190 = vunpack.c.l.s4 839922192
    %v191 = vunpack.c.0.s8 %v190
    %v192 = vperm.slane %v187, %v191
    %v193 = vunpack.c.l.bf16 %v169
    %v194 = vunpack.c.h.bf16 %v169
    %v195 = vunpack.c.l.bf16 %v170
    %v196 = vunpack.c.h.bf16 %v170
    %v197 = vunpack.c.l.bf16 %v171
    %v198 = vunpack.c.h.bf16 %v171
    %v199 = vunpack.c.l.bf16 %v172
    %v200 = vunpack.c.h.bf16 %v172
    %v201 = vunpack.c.l.bf16 %v183
    %v202 = vunpack.c.l.bf16 %v192
    %v203 = vadd.f32 %v193, %v201
    %v204 = vadd.f32 %v194, %v201
    %v205 = vadd.f32 %v195, %v201
    %v206 = vadd.f32 %v196, %v201
    %v207 = vadd.f32 %v197, %v202
    %v208 = vadd.f32 %v198, %v202
    %v209 = vadd.f32 %v199, %v202
    %v210 = vadd.f32 %v200, %v202
    %v211 = vpack.c.bf16 %v204, %v203
    %v212 = vpack.c.bf16 %v206, %v205
    %v213 = vpack.c.bf16 %v208, %v207
    %v214 = vpack.c.bf16 %v210, %v209
    %v215 = vld [vmem:[%s4] sm:$0xff]
    %v216 = vld [vmem:[%s4 + $0x8] sm:$0xff]
    %v217 = vld [vmem:[%s5] sm:$0xff]
    %v218 = vld [vmem:[%s5 + $0x8] sm:$0xff]
    %v219 = vunpack.c.l.bf16 %v211
    %v220 = vunpack.c.h.bf16 %v211
    %v221 = vunpack.c.l.bf16 %v213
    %v222 = vunpack.c.h.bf16 %v213
    %v223 = vadd.f32 %v219, %v220
    %224 = vadd.xlane.f32.xlu0 %v223
    %v225 = vpop.xlane.xlu0 %224
    %v226 = vadd.f32 %v221, %v222
    %227 = vadd.xlane.f32.xlu0 %v226
    %v228 = vpop.xlane.xlu0 %227
    %v229 = vmul.f32 %v225, 0.00390625
    %v230 = vmul.f32 %v228, 0.00390625
    %v231 = vmul.f32 %v215, %v229
    %v232 = vmul.f32 %v216, %v230
    %vm233 = vcmask 31744
    %v234 = vsel %vm233, %v231, 0.0
    %v235 = vsel %vm233, %v232, 0.0
    %v236 = vadd.f32 %v234, %v235
    %v237 = vrot.slane %v236, 4
    %v238 = vadd.f32 %v236, %v237
    %v239 = vrot.slane %v238, 2
    %v240 = vadd.f32 %v238, %v239
    %v241 = vrot.slane %v240, 1
    %v242 = vadd.f32 %v240, %v241
    %v243 = vmax.f32 %v242, 0.0
    %v244 = vmul.f32 %v217, %v243
    %v245 = vmul.f32 %v218, %v243
    %v246 = vsel %vm233, %v244, 0.0
    %247 = vadd.xlane.f32.xlu0 %v246
    %v248 = vpop.xlane.xlu0 %247
    %v249 = vsel %vm233, %v245, 0.0
    %250 = vadd.xlane.f32.xlu0 %v249
    %v251 = vpop.xlane.xlu0 %250
    %v252 = vadd.f32 %v248, 3.0
    %v253 = vadd.f32 %v251, 3.0
    %v254 = vmul.f32 %v252, 0.16666667
    %v255 = vmul.f32 %v253, 0.16666667
    %v256 = vmax.f32 %v254, 0.0
    %v257 = vmax.f32 %v255, 0.0
    %v258 = vmin.f32 %v256, 1.0
    %v259 = vmin.f32 %v257, 1.0
    %v260 = vpack.c.bf16 %v258, %v258
    %v261 = vpack.c.bf16 %v259, %v259
    %v262 = vunpack.c.l.bf16 %v260
    %v263 = vunpack.c.l.bf16 %v261
    %v264 = vmul.f32 %v219, %v262
    %v265 = vmul.f32 %v220, %v262
    %v266 = vmul.f32 %v221, %v263
    %v267 = vmul.f32 %v222, %v263
    %v268 = vpack.c.bf16 %v265, %v264
    %v269 = vpack.c.bf16 %v267, %v266
    %v270 = vunpack.c.l.bf16 %v212
    %v271 = vunpack.c.h.bf16 %v212
    %v272 = vunpack.c.l.bf16 %v214
    %v273 = vunpack.c.h.bf16 %v214
    %v274 = vadd.f32 %v270, %v271
    %275 = vadd.xlane.f32.xlu0 %v274
    %v276 = vpop.xlane.xlu0 %275
    %v277 = vadd.f32 %v272, %v273
    %278 = vadd.xlane.f32.xlu0 %v277
    %v279 = vpop.xlane.xlu0 %278
    %v280 = vmul.f32 %v276, 0.00390625
    %v281 = vmul.f32 %v279, 0.00390625
    %v282 = vmul.f32 %v215, %v280
    %v283 = vmul.f32 %v216, %v281
    %v284 = vsel %vm233, %v282, 0.0
    %v285 = vsel %vm233, %v283, 0.0
    %v286 = vadd.f32 %v284, %v285
    %v287 = vrot.slane %v286, 4
    %v288 = vadd.f32 %v286, %v287
    %v289 = vrot.slane %v288, 2
    %v290 = vadd.f32 %v288, %v289
    %v291 = vrot.slane %v290, 1
    %v292 = vadd.f32 %v290, %v291
    %v293 = vmax.f32 %v292, 0.0
    %v294 = vmul.f32 %v217, %v293
    %v295 = vmul.f32 %v218, %v293
    %v296 = vsel %vm233, %v294, 0.0
    %297 = vadd.xlane.f32.xlu0 %v296
    %v298 = vpop.xlane.xlu0 %297
    %v299 = vsel %vm233, %v295, 0.0
    %300 = vadd.xlane.f32.xlu0 %v299
    %v301 = vpop.xlane.xlu0 %300
    %v302 = vadd.f32 %v298, 3.0
    %v303 = vadd.f32 %v301, 3.0
    %v304 = vmul.f32 %v302, 0.16666667
    %v305 = vmul.f32 %v303, 0.16666667
    %v306 = vmax.f32 %v304, 0.0
    %v307 = vmax.f32 %v305, 0.0
    %v308 = vmin.f32 %v306, 1.0
    %v309 = vmin.f32 %v307, 1.0
    %v310 = vpack.c.bf16 %v308, %v308
    %v311 = vpack.c.bf16 %v309, %v309
    %v312 = vunpack.c.l.bf16 %v310
    %v313 = vunpack.c.l.bf16 %v311
    %v314 = vmul.f32 %v270, %v312
    %v315 = vmul.f32 %v271, %v312
    %v316 = vmul.f32 %v272, %v313
    %v317 = vmul.f32 %v273, %v313
    %v318 = vpack.c.bf16 %v315, %v314
    %v319 = vpack.c.bf16 %v317, %v316
    %v322 = vunpack.c.l.b16 %v268
    %v323 = vunpack.c.h.b16 %v268
    %v324 = vunpack.c.l.b16 %v269
    %v325 = vunpack.c.h.b16 %v269
    %v326 = vpack.c.b16 %v324, %v322
    %v327 = vpack.c.b16 %v325, %v323
    %v332 = vunpack.c.l.b16 %v318
    %v333 = vunpack.c.h.b16 %v318
    %v334 = vunpack.c.l.b16 %v319
    %v335 = vunpack.c.h.b16 %v319
    %v336 = vpack.c.b16 %v334, %v332
    %v337 = vpack.c.b16 %v335, %v333
    %v340 = vunpack.c.l.bf16 %v326
    %v341 = vunpack.c.l.bf16 %v327
    %v342 = vunpack.c.l.bf16 %v336
    %v343 = vunpack.c.l.bf16 %v337
    %v344 = vunpack.c.h.bf16 %v326
    %v345 = vunpack.c.h.bf16 %v327
    %v346 = vunpack.c.h.bf16 %v336
    %v347 = vunpack.c.h.bf16 %v337
    %v348 = vadd.f32 %v340, 3.0
    %v349 = vadd.f32 %v341, 3.0
    %v350 = vadd.f32 %v342, 3.0
    %v351 = vadd.f32 %v343, 3.0
    %v352 = vadd.f32 %v344, 3.0
    %v353 = vadd.f32 %v345, 3.0
    %v354 = vadd.f32 %v346, 3.0
    %v355 = vadd.f32 %v347, 3.0
    %v356 = vpack.c.bf16 %v349, %v348
    %v357 = vpack.c.bf16 %v351, %v350
    %v358 = vpack.c.bf16 %v353, %v352
    %v359 = vpack.c.bf16 %v355, %v354
    %v360 = vunpack.c.l.bf16 %v356
    %v361 = vunpack.c.h.bf16 %v356
    %v362 = vunpack.c.l.bf16 %v357
    %v363 = vunpack.c.h.bf16 %v357
    %v364 = vunpack.c.l.bf16 %v358
    %v365 = vunpack.c.h.bf16 %v358
    %v366 = vunpack.c.l.bf16 %v359
    %v367 = vunpack.c.h.bf16 %v359
    %v368 = vmul.f32 %v360, 0.16699219
    %v369 = vmul.f32 %v361, 0.16699219
    %v370 = vmul.f32 %v362, 0.16699219
    %v371 = vmul.f32 %v363, 0.16699219
    %v372 = vmul.f32 %v364, 0.16699219
    %v373 = vmul.f32 %v365, 0.16699219
    %v374 = vmul.f32 %v366, 0.16699219
    %v375 = vmul.f32 %v367, 0.16699219
    %v376 = vpack.c.bf16 %v369, %v368
    %v377 = vpack.c.bf16 %v371, %v370
    %v378 = vpack.c.bf16 %v373, %v372
    %v379 = vpack.c.bf16 %v375, %v374
    %v380 = vunpack.c.l.bf16 %v376
    %v381 = vunpack.c.h.bf16 %v376
    %v382 = vunpack.c.l.bf16 %v377
    %v383 = vunpack.c.h.bf16 %v377
    %v384 = vunpack.c.l.bf16 %v378
    %v385 = vunpack.c.h.bf16 %v378
    %v386 = vunpack.c.l.bf16 %v379
    %v387 = vunpack.c.h.bf16 %v379
    %v388 = vmax.f32 %v380, 0.0
    %v389 = vmax.f32 %v381, 0.0
    %v390 = vmax.f32 %v382, 0.0
    %v391 = vmax.f32 %v383, 0.0
    %v392 = vmax.f32 %v384, 0.0
    %v393 = vmax.f32 %v385, 0.0
    %v394 = vmax.f32 %v386, 0.0
    %v395 = vmax.f32 %v387, 0.0
    %v396 = vpack.c.bf16 %v389, %v388
    %v397 = vpack.c.bf16 %v391, %v390
    %v398 = vpack.c.bf16 %v393, %v392
    %v399 = vpack.c.bf16 %v395, %v394
    %v400 = vunpack.c.l.bf16 %v396
    %v401 = vunpack.c.h.bf16 %v396
    %v402 = vunpack.c.l.bf16 %v397
    %v403 = vunpack.c.h.bf16 %v397
    %v404 = vunpack.c.l.bf16 %v398
    %v405 = vunpack.c.h.bf16 %v398
    %v406 = vunpack.c.l.bf16 %v399
    %v407 = vunpack.c.h.bf16 %v399
    %v408 = vmin.f32 %v400, 1.0
    %v409 = vmin.f32 %v401, 1.0
    %v410 = vmin.f32 %v402, 1.0
    %v411 = vmin.f32 %v403, 1.0
    %v412 = vmin.f32 %v404, 1.0
    %v413 = vmin.f32 %v405, 1.0
    %v414 = vmin.f32 %v406, 1.0
    %v415 = vmin.f32 %v407, 1.0
    %v416 = vpack.c.bf16 %v409, %v408
    %v417 = vpack.c.bf16 %v411, %v410
    %v418 = vpack.c.bf16 %v413, %v412
    %v419 = vpack.c.bf16 %v415, %v414
    %v420 = vunpack.c.l.bf16 %v416
    %v421 = vunpack.c.h.bf16 %v416
    %v422 = vunpack.c.l.bf16 %v417
    %v423 = vunpack.c.h.bf16 %v417
    %v424 = vunpack.c.l.bf16 %v418
    %v425 = vunpack.c.h.bf16 %v418
    %v426 = vunpack.c.l.bf16 %v419
    %v427 = vunpack.c.h.bf16 %v419
    %v428 = vadd.f32 %v420, 3.0
    %v429 = vadd.f32 %v421, 3.0
    %v430 = vadd.f32 %v422, 3.0
    %v431 = vadd.f32 %v423, 3.0
    %v432 = vadd.f32 %v424, 3.0
    %v433 = vadd.f32 %v425, 3.0
    %v434 = vadd.f32 %v426, 3.0
    %v435 = vadd.f32 %v427, 3.0
    %v436 = vpack.c.bf16 %v429, %v428
    %v437 = vpack.c.bf16 %v431, %v430
    %v438 = vpack.c.bf16 %v433, %v432
    %v439 = vpack.c.bf16 %v435, %v434
    %v440 = vunpack.c.l.bf16 %v436
    %v441 = vunpack.c.h.bf16 %v436
    %v442 = vunpack.c.l.bf16 %v437
    %v443 = vunpack.c.h.bf16 %v437
    %v444 = vunpack.c.l.bf16 %v438
    %v445 = vunpack.c.h.bf16 %v438
    %v446 = vunpack.c.l.bf16 %v439
    %v447 = vunpack.c.h.bf16 %v439
    %v448 = vmul.f32 %v440, 0.16699219
    %v449 = vmul.f32 %v441, 0.16699219
    %v450 = vmul.f32 %v442, 0.16699219
    %v451 = vmul.f32 %v443, 0.16699219
    %v452 = vmul.f32 %v444, 0.16699219
    %v453 = vmul.f32 %v445, 0.16699219
    %v454 = vmul.f32 %v446, 0.16699219
    %v455 = vmul.f32 %v447, 0.16699219
    %v456 = vpack.c.bf16 %v449, %v448
    %v457 = vpack.c.bf16 %v451, %v450
    %v458 = vpack.c.bf16 %v453, %v452
    %v459 = vpack.c.bf16 %v455, %v454
    %v460 = vunpack.c.l.bf16 %v456
    %v461 = vunpack.c.h.bf16 %v456
    %v462 = vunpack.c.l.bf16 %v457
    %v463 = vunpack.c.h.bf16 %v457
    %v464 = vunpack.c.l.bf16 %v458
    %v465 = vunpack.c.h.bf16 %v458
    %v466 = vunpack.c.l.bf16 %v459
    %v467 = vunpack.c.h.bf16 %v459
    %v468 = vmul.f32 %v420, %v460
    %v469 = vmul.f32 %v421, %v461
    %v470 = vmul.f32 %v422, %v462
    %v471 = vmul.f32 %v423, %v463
    %v472 = vmul.f32 %v424, %v464
    %v473 = vmul.f32 %v425, %v465
    %v474 = vmul.f32 %v426, %v466
    %v475 = vmul.f32 %v427, %v467
    %v476 = vpack.c.bf16 %v472, %v468
    %v477 = vpack.c.bf16 %v473, %v469
    %v478 = vpack.c.bf16 %v474, %v470
    %v479 = vpack.c.bf16 %v475, %v471
    %v480 = vld [vmem:[%s6] sm:$0xf]
    %vm481 = vcmask 130048
    %v483 = vsel %vm481, %v480, 0
    %485 = vmatpush.bf16.msra.mxu0 0
    %486 = vmatpush.bf16.msra.mxu0 0
    %487 = vmatpush.bf16.msra.mxu0 0
    %488 = vmatpush.bf16.msra.mxu0 0
    %489 = vmatpush.bf16.msra.mxu0 0
    %490 = vmatpush.bf16.msra.mxu0 0
    %491 = vmatpush.bf16.msra.mxu0 0
    %492 = vmatpush.bf16.msra.mxu0 %v476
    %493 = vmatmul.bf16.gmra.mxu0 %v483
    %v494 = vpop.f32.mrf.mxu0
    %v495 = vadd.f32 0.0, %v494
    %v496 = vpop.f32.mrf.mxu0
    %497 = vdwg.mxu0
    %498 = vmatpush.bf16.msra.mxu0 0
    %499 = vmatpush.bf16.msra.mxu0 0
    %500 = vmatpush.bf16.msra.mxu0 0
    %501 = vmatpush.bf16.msra.mxu0 0
    %502 = vmatpush.bf16.msra.mxu0 0
    %503 = vmatpush.bf16.msra.mxu0 0
    %504 = vmatpush.bf16.msra.mxu0 0
    %505 = vmatpush.bf16.msra.mxu0 %v477
    %506 = vmatmul.bf16.gmra.mxu0 %v483
    %v507 = vpop.f32.mrf.mxu0
    %v508 = vadd.f32 0.0, %v507
    %v509 = vpop.f32.mrf.mxu0
    %510 = vdwg.mxu0
    %511 = vmatpush.bf16.msra.mxu0 0
    %512 = vmatpush.bf16.msra.mxu0 0
    %513 = vmatpush.bf16.msra.mxu0 0
    %514 = vmatpush.bf16.msra.mxu0 0
    %515 = vmatpush.bf16.msra.mxu0 0
    %516 = vmatpush.bf16.msra.mxu0 0
    %517 = vmatpush.bf16.msra.mxu0 0
    %518 = vmatpush.bf16.msra.mxu0 %v478
    %519 = vmatmul.bf16.gmra.mxu0 %v483
    %v520 = vpop.f32.mrf.mxu0
    %v521 = vadd.f32 0.0, %v520
    %v522 = vpop.f32.mrf.mxu0
    %523 = vdwg.mxu0
    %524 = vmatpush.bf16.msra.mxu0 0
    %525 = vmatpush.bf16.msra.mxu0 0
    %526 = vmatpush.bf16.msra.mxu0 0
    %527 = vmatpush.bf16.msra.mxu0 0
    %528 = vmatpush.bf16.msra.mxu0 0
    %529 = vmatpush.bf16.msra.mxu0 0
    %530 = vmatpush.bf16.msra.mxu0 0
    %531 = vmatpush.bf16.msra.mxu0 %v479
    %532 = vmatmul.bf16.gmra.mxu0 %v483
    %v533 = vpop.f32.mrf.mxu0
    %v534 = vadd.f32 0.0, %v533
    %v535 = vpop.f32.mrf.mxu0
    %536 = vdwg.mxu0
    %537 = vst [vmem:[#allocation2] sm:$0xff] %v495
    %538 = vst [vmem:[#allocation2 + $0x8] sm:$0xff] %v508
    %539 = vst [vmem:[#allocation2 + $0x10] sm:$0xff] %v521
    %540 = vst [vmem:[#allocation2 + $0x18] sm:$0xff] %v534
    // Predicated region
    $region30: #{tpu_custom_call.1} parent=1 // pred_check
      _
    $region31: #{tpu_custom_call.1} parent=1 // pred_check_branch
      %542 = sbr.rel (0) target = $region33
    $region32: #{tpu_custom_call.1} parent=1 // pred_region
      %544 = vsyncadd [#allocation3], 0
      %s546 = sshll.u32 [#allocation2], 4
      %s547 = int_to_ptr.vmem [resolvable:$true] %s546
      %s548 = sshll.u32 %s7, 4
      %s549 = int_to_ptr.hbm [resolvable:$true] %s548
      %551 = dma.vmem_to_hbm [thread:$0]  %s547, 512, %s549, [#allocation3]
    $region33: #{tpu_custom_call.1} parent=1 // pred_fallthru
      _
    // Predicated region
    $region34: #{tpu_custom_call.1} parent=1 // pred_check
      _
    $region35: #{tpu_custom_call.1} parent=1 // pred_check_branch
      %553 = sbr.rel (0) target = $region37
    $region36: #{tpu_custom_call.1} parent=1 // pred_region
      %555 = dma.done [#allocation3], 512
    $region37: #{tpu_custom_call.1} parent=1 // pred_fallthru
      _
    %556 = vsyncpa [#allocation3], 1

</llo_original>
